<compile_context>
chip_gen: v7x
topology: tpu7x:2x2x1
jax: 0.10.0
libtpu: 0.0.40
codegen_flags: <defaults>
</compile_context>

<pallas_src>
import jax
import jax.numpy as jnp
from jax.experimental import pallas as pl
from jax.experimental.pallas import tpu as pltpu


def _linear_kernel(s_ref, w_ref, b_ref, o_ref):
    # s_ref: (TB, H) VMEM   w_ref: (H, 1) VMEM   b_ref: (1,) SMEM   o_ref: (TB, 1) VMEM
    acc = jnp.dot(s_ref[...], w_ref[...],
                  preferred_element_type=jnp.float32)        # MXU, f32 accumulate
    o_ref[...] = (acc + b_ref[0].astype(jnp.float32)).astype(o_ref.dtype)


def _round_up(x, m):
    return (x + m - 1) // m * m


def _choose_tb(B, H, block_b, itemsize):
    """Pick the batch tile size TB (always a multiple of 8)."""
    if B <= 256:
        # Tiny batch: one 8-aligned tile; launch overhead dominates anyway.
        return _round_up(B, 8)
    # Large batch: big lane-dense tile amortizes the per-step pipeline
    # overhead, but keep >= 2 grid steps so v7x's two TensorCores both get
    # work on the "parallel" grid axis.
    tb = min(block_b, _round_up(-(-B // 2), 128))
    # VMEM cap: 2 double-buffered input tiles of TB x round_up(H,128) lanes
    # must stay under the smallest scoped-VMEM default (16 MiB on v5e);
    # budget 12 MiB to leave headroom for the weight/output buffers.
    bytes_per_row = _round_up(H, 128) * itemsize
    vmem_budget = 12 * 1024 * 1024
    tb_cap = max(128, (vmem_budget // (2 * bytes_per_row)) // 128 * 128)
    return max(128, min(tb, tb_cap))


def prop_pred_forward(s, weight, bias, *, block_b=8192):
    """s: (B, H); weight: (1, H) (PyTorch Linear layout); bias: (1,). Returns (B, 1)."""
    B, H = s.shape
    w_col = weight.reshape(H, 1)                    # (H, 1) column for the MXU dot
    TB = _choose_tb(B, H, block_b, jnp.dtype(s.dtype).itemsize)
    num_tiles = pl.cdiv(B, TB)                      # ragged last block handled by Pallas

    out = pl.pallas_call(
        _linear_kernel,
        out_shape=jax.ShapeDtypeStruct((B, 1), s.dtype),
        grid=(num_tiles,),
        in_specs=[
            # s tiles stream through VMEM, double-buffered by Pallas.
            pl.BlockSpec((TB, H), lambda i: (i, 0)),
            # Weight column: constant block index -> loaded once, stays resident.
            pl.BlockSpec((H, 1), lambda i: (0, 0)),
            # Bias: scalar in SMEM (no per-step VMEM tile / DMA).
            pl.BlockSpec(memory_space=pltpu.MemorySpace.SMEM),
        ],
        out_specs=pl.BlockSpec((TB, 1), lambda i: (i, 0)),
        compiler_params=pltpu.CompilerParams(
            dimension_semantics=("parallel",),
        ),
    )(s, w_col, bias)

    return out


if __name__ == "__main__":
    hidden_size = 25
    batch = 8

    key = jax.random.PRNGKey(0)
    k_s, k_w, k_b, k_s2 = jax.random.split(key, 4)

    # Deterministic synthetic parameters (PyTorch Linear shapes: W=(1,H), b=(1,))
    s = jax.random.normal(k_s, (batch, hidden_size), dtype=jnp.float32)
    bound = 1.0 / (hidden_size ** 0.5)
    weight = jax.random.uniform(
        k_w, (1, hidden_size), minval=-bound, maxval=bound, dtype=jnp.float32)
    bias = jax.random.uniform(
        k_b, (1,), minval=-bound, maxval=bound, dtype=jnp.float32)

    # Small-batch path (single tile)
    out = jax.block_until_ready(prop_pred_forward(s, weight, bias))
    ref = s @ weight.T + bias
    assert out.shape == (batch, 1)
    assert jnp.allclose(out, ref, atol=1e-5, rtol=1e-5)

    # Multi-tile + ragged-last-block path (B not a multiple of the tile)
    big_batch = 1037
    s_big = jax.random.normal(k_s2, (big_batch, hidden_size), dtype=jnp.float32)
    out_big = jax.block_until_ready(prop_pred_forward(s_big, weight, bias))
    ref_big = s_big @ weight.T + bias
    assert out_big.shape == (big_batch, 1)
    assert jnp.allclose(out_big, ref_big, atol=1e-5, rtol=1e-5)

    print("KERNEL_OK")
</pallas_src>

<mosaic_0001>
module attributes {stable_mosaic.version = 11 : i64} {
  func.func @_linear_kernel(%arg0: i32, %arg1: memref<8x25xf32, #tpu.memory_space<vmem>>, %arg2: memref<25x1xf32, #tpu.memory_space<vmem>>, %arg3: memref<1xf32, #tpu.memory_space<smem>>, %arg4: memref<8x1xf32, #tpu.memory_space<vmem>>) attributes {dimension_semantics = [#tpu.dimension_semantics<parallel>], iteration_bounds = array<i64: 1>, scalar_prefetch = 0 : i64, scratch_operands = 0 : i64, tpu.core_type = #tpu.core_type<tc>, window_params = [{transform_indices = @transform_0, window_bounds = array<i64: 8, 25>}, {pipeline_mode = #tpu.pipeline_mode<synchronous>, transform_indices = @transform_1, window_bounds = array<i64: 25, 1>}, {transform_indices = @transform_2, window_bounds = array<i64: 1>}, {transform_indices = @transform_3, window_bounds = array<i64: 8, 1>}]} {
    %c0 = arith.constant 0 : index
    %c0_0 = arith.constant 0 : index
    %0 = vector.load %arg1[%c0, %c0_0] : memref<8x25xf32, #tpu.memory_space<vmem>>, vector<8x25xf32>
    %c0_1 = arith.constant 0 : index
    %c0_2 = arith.constant 0 : index
    %1 = vector.load %arg2[%c0_1, %c0_2] : memref<25x1xf32, #tpu.memory_space<vmem>>, vector<25x1xf32>
    %cst = arith.constant dense<0.000000e+00> : vector<8x1xf32>
    %2 = tpu.matmul %0, %1, %cst {dimension_numbers = #tpu.dot_dimension_numbers<[1], [0], [0], [1], [0, 0, 1, 1], [], []>} : vector<8x25xf32>, vector<25x1xf32>, vector<8x1xf32> -> vector<8x1xf32>
    %c0_3 = arith.constant 0 : index
    %3 = memref.load %arg3[%c0_3] : memref<1xf32, #tpu.memory_space<smem>>
    %4 = vector.broadcast %3 : f32 to vector<8x1xf32>
    %5 = arith.addf %2, %4 : vector<8x1xf32>
    %c0_4 = arith.constant 0 : index
    %c0_5 = arith.constant 0 : index
    %6 = vector.load %arg4[%c0_4, %c0_5] : memref<8x1xf32, #tpu.memory_space<vmem>>, vector<8x1xf32>
    tpu.vector_store %arg4[%c0_4, %c0_5], %5 {strides = array<i32>} : memref<8x1xf32, #tpu.memory_space<vmem>>, vector<8x1xf32>,
    return
  }
  func.func @transform_0(%arg0: i32) -> (i32, i32) {
    %c0_i32 = arith.constant 0 : i32
    %c0_i32_0 = arith.constant 0 : i32
    return %arg0, %c0_i32 : i32, i32
  }
  func.func @transform_1(%arg0: i32) -> (i32, i32) {
    %c0_i32 = arith.constant 0 : i32
    %c0_i32_0 = arith.constant 0 : i32
    %c0_i32_1 = arith.constant 0 : i32
    return %c0_i32, %c0_i32_0 : i32, i32
  }
  func.func @transform_2(%arg0: i32) -> i32 {
    %c0_i32 = arith.constant 0 : i32
    %c0_i32_0 = arith.constant 0 : i32
    return %c0_i32 : i32
  }
  func.func @transform_3(%arg0: i32) -> (i32, i32) {
    %c0_i32 = arith.constant 0 : i32
    %c0_i32_0 = arith.constant 0 : i32
    return %arg0, %c0_i32 : i32, i32
  }
}

</mosaic_0001>

<llo_original>
// kernel: tpu_custom_call.1
$region0: #{tpu_custom_call.1}
  #allocation0 [shape = 'u32[]', space=smem, size = 0x4, offset = 0x4, fixed_abs, tag = 'smem constant byte address 0x4 - core index']
  #allocation1 [shape = 'u32[144,128]{1,0:T(1,128)}', space=vmem, size = 0x12000, scoped, tag = 'internal scratch']
  #allocation2 [shape = 'f32[1]{0:T(128)S(6)}', space=smem, size = 0x200, scoped, tag = 'scoped memory for tpu_custom_call.1']
  %s0 = inlined_call_operand.vmem [shape: f32[8,25], index: 0, kind: input, shape index: {}]
  %s1 = inlined_call_operand.vmem [shape: f32[25,1], index: 1, kind: input, shape index: {}]
  %s2 = inlined_call_operand.<no memory space> [shape: f32[1], index: 2, kind: input, shape index: {}]
  %s3 = inlined_call_operand.vmem [shape: f32[8,1], index: 3, kind: output, shape index: {}]
  %s4 = sld [smem:[#allocation0]]
  $region22: #{tpu_custom_call.1} parent=0
    _
  %s6 = ssub.s32 1, %s4
  %s7 = scalar_select 0, %s6, %s4
  %8 = sst [smem:[#allocation2]] %s2
  // Predicated region
  $region2: #{tpu_custom_call.1} parent=0 // pred_check
    _
  $region3: #{tpu_custom_call.1} parent=0 // pred_check_branch
    %10 = sbr.rel (0) target = $region5
  $region4: #{tpu_custom_call.1} parent=0 // pred_region
    _
  $region5: #{tpu_custom_call.1} parent=0 // pred_fallthru
    _
  // Predicated region
  $region6: #{tpu_custom_call.1} parent=0 // pred_check
    _
  $region7: #{tpu_custom_call.1} parent=0 // pred_check_branch
    %12 = sbr.rel (0) target = $region9
  $region8: #{tpu_custom_call.1} parent=0 // pred_region
    _
  $region9: #{tpu_custom_call.1} parent=0 // pred_fallthru
    _
  // Predicated region
  $region10: #{tpu_custom_call.1} parent=0 // pred_check
    _
  $region11: #{tpu_custom_call.1} parent=0 // pred_check_branch
    %14 = sbr.rel (0) target = $region13
  $region12: #{tpu_custom_call.1} parent=0 // pred_region
    _
  $region13: #{tpu_custom_call.1} parent=0 // pred_fallthru
    _
  %v15 = vld [vmem:[%s0] sm:$0xff]
  %v16 = vld [vmem:[%s1] sm:$0xff]
  %v17 = vld [vmem:[%s1 + $0x8] sm:$0xff]
  %v18 = vld [vmem:[%s1 + $0x10] sm:$0xff]
  %v19 = vld [vmem:[%s1 + $0x18] sm:$0x1]
  %s20 = sld [smem:[#allocation2]]
  %v21 = vstv %s20
  %vm22 = vcmask 203776
  %v24 = vsel %vm22, %v15, 0
  %vm26 = vcmask 1040384
  %v28 = vsel %vm26, %v19, 0
  %30 = vmatprep.subr.mxu0 0.0
  %31 = vmatpush1.msra.mxu0 %v16
  %32 = vmatprep.subr.mxu0 0.0
  %33 = vmatpush1.msra.mxu0 %v17
  %34 = vmatprep.subr.mxu0 0.0
  %35 = vmatpush1.msra.mxu0 %v18
  %36 = vmatprep.subr.mxu0 0.0
  %37 = vmatpush1.msra.mxu0 %v28
  %38 = vmatprep.subr.mxu0 0.0
  %39 = vmatpush1.msra.mxu0 0.0
  %40 = vmatprep.subr.mxu0 0.0
  %41 = vmatpush1.msra.mxu0 0.0
  %42 = vmatprep.subr.mxu0 0.0
  %43 = vmatpush1.msra.mxu0 0.0
  %44 = vmatprep.subr.mxu0 0.0
  %45 = vmatpush1.msra.mxu0 0.0
  %46 = vmatprep.subr.mxu0 0.0
  %47 = vmatpush1.msra.mxu0 0.0
  %48 = vmatprep.subr.mxu0 0.0
  %49 = vmatpush1.msra.mxu0 0.0
  %50 = vmatprep.subr.mxu0 0.0
  %51 = vmatpush1.msra.mxu0 0.0
  %52 = vmatprep.subr.mxu0 0.0
  %53 = vmatpush1.msra.mxu0 0.0
  %54 = vmatprep.subr.mxu0 0.0
  %55 = vmatpush1.msra.mxu0 0.0
  %56 = vmatprep.subr.mxu0 0.0
  %57 = vmatpush1.msra.mxu0 0.0
  %58 = vmatprep.subr.mxu0 0.0
  %59 = vmatpush1.msra.mxu0 0.0
  %60 = vmatprep.subr.mxu0 0.0
  %61 = vmatpush1.msra.mxu0 0.0
  %62 = vmatprep.subr.mxu0 0.0
  %63 = vmatpush1.msra.mxu0 0.0
  %64 = vmatprep.subr.mxu0 0.0
  %65 = vmatpush1.msra.mxu0 0.0
  %66 = vmatprep.subr.mxu0 0.0
  %67 = vmatpush1.msra.mxu0 0.0
  %68 = vmatprep.subr.mxu0 0.0
  %69 = vmatpush1.msra.mxu0 0.0
  %70 = vmatprep.subr.mxu0 0.0
  %71 = vmatpush1.msra.mxu0 0.0
  %72 = vmatprep.subr.mxu0 0.0
  %73 = vmatpush1.msra.mxu0 0.0
  %74 = vmatprep.subr.mxu0 0.0
  %75 = vmatpush1.msra.mxu0 0.0
  %76 = vmatprep.subr.mxu0 0.0
  %77 = vmatpush1.msra.mxu0 0.0
  %78 = vmatprep.subr.mxu0 0.0
  %79 = vmatpush1.msra.mxu0 0.0
  %80 = vmatprep.subr.mxu0 0.0
  %81 = vmatpush1.msra.mxu0 0.0
  %82 = vmatprep.subr.mxu0 0.0
  %83 = vmatpush1.msra.mxu0 0.0
  %84 = vmatprep.subr.mxu0 0.0
  %85 = vmatpush1.msra.mxu0 0.0
  %86 = vmatprep.subr.mxu0 0.0
  %87 = vmatpush1.msra.mxu0 0.0
  %88 = vmatprep.subr.mxu0 0.0
  %89 = vmatpush1.msra.mxu0 0.0
  %90 = vmatprep.subr.mxu0 0.0
  %91 = vmatpush1.msra.mxu0 0.0
  %92 = vmatprep.subr.mxu0 0.0
  %93 = vmatpush1.msra.mxu0 0.0
  %94 = vmatprep.mubr.f32.mxu0 0.0
  %95 = vmatmul.mubr.f32.gmra.mrb[0].mxu0 %v24
  %v96 = vpop.f32.mrb[0].mxu0
  %v97 = vadd.f32 %v21, %v96
  %v98 = vpop.f32.mrb[0].mxu0
  %99 = vdwg.mxu0
  %vm100 = vcmask 7168
  %101 = vst.msk [vmem:[%s3] sm:$0xff] %vm100, %v97
  // Predicated region
  $region14: #{tpu_custom_call.1} parent=0 // pred_check
    _
  $region15: #{tpu_custom_call.1} parent=0 // pred_check_branch
    %103 = sbr.rel (0) target = $region17
  $region16: #{tpu_custom_call.1} parent=0 // pred_region
    _
  $region17: #{tpu_custom_call.1} parent=0 // pred_fallthru
    _
  // Predicated region
  $region18: #{tpu_custom_call.1} parent=0 // pred_check
    _
  $region19: #{tpu_custom_call.1} parent=0 // pred_check_branch
    %105 = sbr.rel (0) target = $region21
  $region20: #{tpu_custom_call.1} parent=0 // pred_region
    _
  $region21: #{tpu_custom_call.1} parent=0 // pred_fallthru
    _

</llo_original>
